<compile_context>
chip_gen: v7x
topology: tpu7x:2x2x1
jax: 0.10.0
libtpu: 0.0.40
codegen_flags: <defaults>
</compile_context>

<pallas_src>
import functools

import jax
import jax.numpy as jnp
from jax.experimental import pallas as pl
from jax.experimental.pallas import tpu as pltpu


def _dueling_qnet_kernel(x_ref, w1_ref, b1_ref, wcat_ref, q_ref, *, n_out):
    # hidden (f32): relu(x @ W1_aug + b1_aug).  Column H of W1_aug is zero and
    # b1_aug[H] == 1, so h[:, H] == 1 and carries the fused layer-2 biases.
    h = jnp.maximum(
        jnp.dot(x_ref[...], w1_ref[...], preferred_element_type=jnp.float32)
        + b1_ref[...].astype(jnp.float32),
        0.0)
    # Fused value + advantage head on one lane-dense (H+1, 128) weight tile.
    out = jnp.dot(h.astype(wcat_ref.dtype), wcat_ref[...],
                  preferred_element_type=jnp.float32)
    # advantage in lanes [0:n_out], value in lane n_out; lanes > n_out are
    # exactly zero because wcat's padded columns (incl. bias row) are zero.
    value = out[:, n_out:n_out + 1]
    adv_sum = jnp.sum(out, axis=1, keepdims=True) - value
    q = out[:, :n_out] + (value - adv_sum * (1.0 / n_out))
    q_ref[...] = q.astype(q_ref.dtype)


def fold_params(params, dtype=jnp.float32):
    """Fold biases into lane-dense weight tiles.

    Call once per parameter update (hoisted out of the per-forward path).
    dtype=jnp.bfloat16 halves streamed HBM bytes on v6e/v7x; the kernel keeps
    f32 accumulation either way.
    """
    w1, b1 = params["w1"], params["b1"]   # (In, H), (H,)
    wv, bv = params["wv"], params["bv"]   # (H, 1), (1,)
    wa, ba = params["wa"], params["ba"]   # (H, O), (O,)
    In, H = w1.shape
    O = wa.shape[1]
    o_pad = 128 * pl.cdiv(O + 1, 128)     # lane-dense MXU N dim (stays 128)

    # Layer 1: (In, H+1); col H has zero weights, bias 1 -> const-1 column.
    w1_aug = jnp.zeros((In, H + 1), jnp.float32).at[:, :H].set(w1)
    b1_aug = (jnp.zeros((1, H + 1), jnp.float32)
              .at[0, :H].set(b1).at[0, H].set(1.0))

    # Layer 2 (fused heads): advantage in cols [0:O], value in col O, fused
    # biases in row H.  NOTE: padded cols [O+1:] (and their bias-row entries)
    # MUST stay zero, otherwise the (sum - value) * (1/O) advantage mean is
    # wrong.
    wcat = jnp.zeros((H + 1, o_pad), jnp.float32)
    wcat = wcat.at[:H, :O].set(wa)
    wcat = wcat.at[H, :O].set(ba)
    wcat = wcat.at[:H, O].set(wv[:, 0])
    wcat = wcat.at[H, O].set(bv[0])

    return {
        "w1_aug": w1_aug.astype(dtype),
        "b1_aug": b1_aug.astype(dtype),
        "wcat": wcat.astype(dtype),
        "n_out": O,
    }


def dueling_qnet_forward(x, folded, *, block_b=1024, out_dtype=jnp.float32):
    """x: (B, input_size) or (input_size,).  folded: output of fold_params."""
    w1_aug, b1_aug, wcat = folded["w1_aug"], folded["b1_aug"], folded["wcat"]
    O = folded["n_out"]

    if x.ndim == 1:
        # PyTorch's `advantage.dim() == 1` branch: output stays 2-D (1, O).
        x = x[None, :]
    B, In = x.shape
    H1 = w1_aug.shape[1]
    o_pad = wcat.shape[1]

    x = x.astype(w1_aug.dtype)

    # Batch tile: multiple of 8, capped at block_b, and >= 2 grid steps when
    # B > 8 so ("parallel",) can shard across both v7x TensorCores.
    if B > 8:
        tb = min(block_b, 8 * pl.cdiv(pl.cdiv(B, 2), 8))
    else:
        tb = 8 * pl.cdiv(B, 8)
    b_pad = tb * pl.cdiv(B, tb)
    if b_pad != B:
        x = jnp.pad(x, ((0, b_pad - B), (0, 0)))

    kernel = functools.partial(_dueling_qnet_kernel, n_out=O)
    q = pl.pallas_call(
        kernel,
        out_shape=jax.ShapeDtypeStruct((b_pad, O), out_dtype),
        grid=(b_pad // tb,),
        in_specs=[
            pl.BlockSpec((tb, In), lambda i: (i, 0)),        # x: streamed
            pl.BlockSpec((In, H1), lambda i: (0, 0)),        # W1_aug: resident
            pl.BlockSpec((1, H1), lambda i: (0, 0)),         # b1_aug: resident
            pl.BlockSpec((H1, o_pad), lambda i: (0, 0)),     # Wcat: resident
        ],
        # Direct (B, O) output: no 128-lane padding, no wrapper re-slice.
        out_specs=pl.BlockSpec((tb, O), lambda i: (i, 0)),
        compiler_params=pltpu.CompilerParams(
            dimension_semantics=("parallel",)),
    )(x, w1_aug, b1_aug, wcat)

    if b_pad != B:
        q = q[:B]
    return q


def init_params(key, input_size, hidden_size, output_size):
    """PyTorch-style uniform(-1/sqrt(fan_in), 1/sqrt(fan_in)) init."""
    ks = jax.random.split(key, 6)

    def unif(k, shape, fan_in):
        bound = 1.0 / jnp.sqrt(fan_in)
        return jax.random.uniform(k, shape, jnp.float32, -bound, bound)

    return {
        "w1": unif(ks[0], (input_size, hidden_size), input_size),
        "b1": unif(ks[1], (hidden_size,), input_size),
        "wv": unif(ks[2], (hidden_size, 1), hidden_size),
        "bv": unif(ks[3], (1,), hidden_size),
        "wa": unif(ks[4], (hidden_size, output_size), hidden_size),
        "ba": unif(ks[5], (output_size,), hidden_size),
    }


def reference_forward(x, p):
    h = jnp.maximum(x @ p["w1"] + p["b1"], 0.0)
    value = h @ p["wv"] + p["bv"]
    adv = h @ p["wa"] + p["ba"]
    return value + (adv - adv.mean(axis=1, keepdims=True))


if __name__ == "__main__":
    # TODO(synk): Dueling_QNet.save() (torch.save / filesystem I/O) has no
    # Pallas equivalent and is intentionally not implemented.
    batch, input_size, hidden_size, output_size = 128, 16, 32, 8

    key = jax.random.PRNGKey(0)
    kx, kp = jax.random.split(key)
    x = jax.random.normal(kx, (batch, input_size), jnp.float32)
    params = init_params(kp, input_size, hidden_size, output_size)
    q_ref = reference_forward(x, params)

    # f32 path: exact semantics of the PyTorch module (grid of 2 batch tiles).
    folded_f32 = fold_params(params, dtype=jnp.float32)
    q = dueling_qnet_forward(x, folded_f32)
    jax.block_until_ready(q)
    assert q.shape == (batch, output_size)
    assert jnp.allclose(q, q_ref, atol=1e-5, rtol=1e-5)

    # bf16 streaming path (v6e/v7x byte reduction; f32 accumulation in-kernel).
    folded_bf16 = fold_params(params, dtype=jnp.bfloat16)
    q_bf16 = dueling_qnet_forward(x, folded_bf16)
    jax.block_until_ready(q_bf16)
    assert jnp.max(jnp.abs(q_bf16 - q_ref)) < 5e-2

    print("KERNEL_OK")
</pallas_src>

<mosaic_0001>
module attributes {stable_mosaic.version = 11 : i64} {
  func.func @_dueling_qnet_kernel(%arg0: i32, %arg1: memref<64x16xf32, #tpu.memory_space<vmem>>, %arg2: memref<16x33xf32, #tpu.memory_space<vmem>>, %arg3: memref<1x33xf32, #tpu.memory_space<vmem>>, %arg4: memref<33x128xf32, #tpu.memory_space<vmem>>, %arg5: memref<64x8xf32, #tpu.memory_space<vmem>>) attributes {dimension_semantics = [#tpu.dimension_semantics<parallel>], iteration_bounds = array<i64: 2>, scalar_prefetch = 0 : i64, scratch_operands = 0 : i64, tpu.core_type = #tpu.core_type<tc>, window_params = [{transform_indices = @transform_0, window_bounds = array<i64: 64, 16>}, {pipeline_mode = #tpu.pipeline_mode<synchronous>, transform_indices = @transform_1, window_bounds = array<i64: 16, 33>}, {pipeline_mode = #tpu.pipeline_mode<synchronous>, transform_indices = @transform_2, window_bounds = array<i64: 1, 33>}, {pipeline_mode = #tpu.pipeline_mode<synchronous>, transform_indices = @transform_3, window_bounds = array<i64: 33, 128>}, {transform_indices = @transform_4, window_bounds = array<i64: 64, 8>}]} {
    %c0 = arith.constant 0 : index
    %c0_0 = arith.constant 0 : index
    %0 = vector.load %arg1[%c0, %c0_0] : memref<64x16xf32, #tpu.memory_space<vmem>>, vector<64x16xf32>
    %c0_1 = arith.constant 0 : index
    %c0_2 = arith.constant 0 : index
    %1 = vector.load %arg2[%c0_1, %c0_2] : memref<16x33xf32, #tpu.memory_space<vmem>>, vector<16x33xf32>
    %cst = arith.constant dense<0.000000e+00> : vector<64x33xf32>
    %2 = tpu.matmul %0, %1, %cst {dimension_numbers = #tpu.dot_dimension_numbers<[1], [0], [0], [1], [0, 0, 1, 1], [], []>} : vector<64x16xf32>, vector<16x33xf32>, vector<64x33xf32> -> vector<64x33xf32>
    %c0_3 = arith.constant 0 : index
    %c0_4 = arith.constant 0 : index
    %3 = vector.load %arg3[%c0_3, %c0_4] : memref<1x33xf32, #tpu.memory_space<vmem>>, vector<1x33xf32>
    %4 = vector.broadcast %3 : vector<1x33xf32> to vector<64x33xf32>
    %5 = arith.addf %2, %4 : vector<64x33xf32>
    %cst_5 = arith.constant 0.000000e+00 : f32
    %6 = vector.broadcast %cst_5 : f32 to vector<64x33xf32>
    %7 = arith.maximumf %5, %6 : vector<64x33xf32>
    %c0_6 = arith.constant 0 : index
    %c0_7 = arith.constant 0 : index
    %8 = vector.load %arg4[%c0_6, %c0_7] : memref<33x128xf32, #tpu.memory_space<vmem>>, vector<33x128xf32>
    %cst_8 = arith.constant dense<0.000000e+00> : vector<64x128xf32>
    %9 = tpu.matmul %7, %8, %cst_8 {dimension_numbers = #tpu.dot_dimension_numbers<[1], [0], [0], [1], [0, 0, 1, 1], [], []>} : vector<64x33xf32>, vector<33x128xf32>, vector<64x128xf32> -> vector<64x128xf32>
    %10 = vector.extract_strided_slice %9 {offsets = [0, 8], sizes = [64, 1], strides = [1, 1]} : vector<64x128xf32> to vector<64x1xf32>
    %cst_9 = arith.constant dense<0.000000e+00> : vector<64xf32>
    %11 = vector.multi_reduction <add>, %9, %cst_9 [1] : vector<64x128xf32> to vector<64xf32>
    %12 = vector.shape_cast %11 : vector<64xf32> to vector<64x1xf32>
    %13 = arith.subf %12, %10 : vector<64x1xf32>
    %14 = vector.extract_strided_slice %9 {offsets = [0, 0], sizes = [64, 8], strides = [1, 1]} : vector<64x128xf32> to vector<64x8xf32>
    %cst_10 = arith.constant 1.250000e-01 : f32
    %15 = vector.broadcast %cst_10 : f32 to vector<64x1xf32>
    %16 = arith.mulf %13, %15 : vector<64x1xf32>
    %17 = arith.subf %10, %16 : vector<64x1xf32>
    %18 = vector.broadcast %17 : vector<64x1xf32> to vector<64x8xf32>
    %19 = arith.addf %14, %18 : vector<64x8xf32>
    %c0_11 = arith.constant 0 : index
    %c0_12 = arith.constant 0 : index
    %20 = vector.load %arg5[%c0_11, %c0_12] : memref<64x8xf32, #tpu.memory_space<vmem>>, vector<64x8xf32>
    tpu.vector_store %arg5[%c0_11, %c0_12], %19 {strides = array<i32>} : memref<64x8xf32, #tpu.memory_space<vmem>>, vector<64x8xf32>,
    return
  }
  func.func @transform_0(%arg0: i32) -> (i32, i32) {
    %c0_i32 = arith.constant 0 : i32
    %c0_i32_0 = arith.constant 0 : i32
    return %arg0, %c0_i32 : i32, i32
  }
  func.func @transform_1(%arg0: i32) -> (i32, i32) {
    %c0_i32 = arith.constant 0 : i32
    %c0_i32_0 = arith.constant 0 : i32
    %c0_i32_1 = arith.constant 0 : i32
    return %c0_i32, %c0_i32_0 : i32, i32
  }
  func.func @transform_2(%arg0: i32) -> (i32, i32) {
    %c0_i32 = arith.constant 0 : i32
    %c0_i32_0 = arith.constant 0 : i32
    %c0_i32_1 = arith.constant 0 : i32
    return %c0_i32, %c0_i32_0 : i32, i32
  }
  func.func @transform_3(%arg0: i32) -> (i32, i32) {
    %c0_i32 = arith.constant 0 : i32
    %c0_i32_0 = arith.constant 0 : i32
    %c0_i32_1 = arith.constant 0 : i32
    return %c0_i32, %c0_i32_0 : i32, i32
  }
  func.func @transform_4(%arg0: i32) -> (i32, i32) {
    %c0_i32 = arith.constant 0 : i32
    %c0_i32_0 = arith.constant 0 : i32
    return %arg0, %c0_i32 : i32, i32
  }
}

</mosaic_0001>

<llo_original>
// kernel: tpu_custom_call.1
$region0: #{tpu_custom_call.1}
  #allocation0 [shape = 'u32[]', space=smem, size = 0x4, offset = 0x4, fixed_abs, tag = 'smem constant byte address 0x4 - core index']
  #allocation1 [shape = 'u32[144,128]{1,0:T(1,128)}', space=vmem, size = 0x12000, scoped, tag = 'internal scratch']
  %s0 = inlined_call_operand.vmem [shape: f32[128,16], index: 0, kind: input, shape index: {}]
  %s1 = inlined_call_operand.vmem [shape: f32[16,33], index: 1, kind: input, shape index: {}]
  %s2 = inlined_call_operand.vmem [shape: f32[1,33], index: 2, kind: input, shape index: {}]
  %s3 = inlined_call_operand.vmem [shape: f32[33,128], index: 3, kind: input, shape index: {}]
  %s4 = inlined_call_operand.vmem [shape: f32[128,8], index: 4, kind: output, shape index: {}]
  %s5 = sld [smem:[#allocation0]]
  $region49: #{tpu_custom_call.1} parent=0
    _
  %s7 = ssub.s32 1, %s5
  %s8 = scalar_select 0, %s7, %s5
  loop: start=0, step=1, limit=4
  $region2: #{tpu_custom_call.1} parent=0 // loop_pre_header
    _
  $region3: #{tpu_custom_call.1} parent=0 // loop_header
    %s10 = sphi 0, %s14
    %p11 = scmp.ge.s32.totalorder %s10, 4
    %s20 = sphi 0, %s22
    %s23 = sphi 0, %s20
    %s24 = sphi 0, %s23
    %s40 = sphi 0, %s24
    %s44 = sphi 0, %s44
    %s46 = sphi 0, %s44
    %s47 = sphi 0, %s46
    %s61 = sphi 0, %s47
    %s65 = sphi 0, %s65
    %s67 = sphi 0, %s65
    %s68 = sphi 0, %s67
    %s82 = sphi 0, %s68
    %s86 = sphi 0, %s86
    %s88 = sphi 0, %s86
    %s89 = sphi 0, %s88
    %s103 = sphi 0, %s89
    %s109 = sphi 0, %s111
    %s112 = sphi 0, %s109
    %s113 = sphi 0, %s112
    %s129 = sphi 0, %s113
  $region4: #{tpu_custom_call.1} parent=0 // loop_header_branch
    %13 = sbr.rel (%p11) target = $region8
  $region5: #{tpu_custom_call.1} parent=0 // loop_body
    %s15 = ssub.s32 %s10, 1
    %s16 = ssub.s32 %s10, 2
    %s17 = sadd.s32 %s10, 1
    %s18 = ssub.s32 %s10, %s17
    %p19 = scmp.eq.s32.totalorder %s18, 0
    %s21 = sadd.s32 %s20, 1
    %s22 = scalar_select %p19, %s20, %s21
    %p25 = pneg %p19
    %p26 = scmp.eq.s32.totalorder %s10, 1
    %p27 = por %p25, %p26
    %p28 = scmp.ne.s32.totalorder %s20, %s23
    %p29 = scmp.eq.s32.totalorder %s10, 0
    %p30 = por %p28, %p29
    %p31 = scmp.ne.s32.totalorder %s20, %s23
    %p32 = scmp.eq.s32.totalorder %s15, 1
    %p33 = por %p31, %p32
    %p34 = scmp.ne.s32.totalorder %s23, %s24
    %p35 = scmp.eq.s32.totalorder %s15, 0
    %p36 = por %p34, %p35
    %p37 = scmp.ne.s32.totalorder %s23, %s24
    %p38 = scmp.eq.s32.totalorder %s16, 1
    %p39 = por %p37, %p38
    %p41 = scmp.ne.s32.totalorder %s24, %s40
    %p42 = scmp.eq.s32.totalorder %s16, 0
    %p43 = por %p41, %p42
    %s45 = sadd.s32 %s44, 1
    %p48 = scmp.eq.s32.totalorder %s10, 1
    %p49 = scmp.ne.s32.totalorder %s44, %s46
    %p50 = scmp.eq.s32.totalorder %s10, 0
    %p51 = por %p49, %p50
    %p52 = scmp.ne.s32.totalorder %s44, %s46
    %p53 = scmp.eq.s32.totalorder %s15, 1
    %p54 = por %p52, %p53
    %p55 = scmp.ne.s32.totalorder %s46, %s47
    %p56 = scmp.eq.s32.totalorder %s15, 0
    %p57 = por %p55, %p56
    %p58 = scmp.ne.s32.totalorder %s46, %s47
    %p59 = scmp.eq.s32.totalorder %s16, 1
    %p60 = por %p58, %p59
    %p62 = scmp.ne.s32.totalorder %s47, %s61
    %p63 = scmp.eq.s32.totalorder %s16, 0
    %p64 = por %p62, %p63
    %s66 = sadd.s32 %s65, 1
    %p69 = scmp.eq.s32.totalorder %s10, 1
    %p70 = scmp.ne.s32.totalorder %s65, %s67
    %p71 = scmp.eq.s32.totalorder %s10, 0
    %p72 = por %p70, %p71
    %p73 = scmp.ne.s32.totalorder %s65, %s67
    %p74 = scmp.eq.s32.totalorder %s15, 1
    %p75 = por %p73, %p74
    %p76 = scmp.ne.s32.totalorder %s67, %s68
    %p77 = scmp.eq.s32.totalorder %s15, 0
    %p78 = por %p76, %p77
    %p79 = scmp.ne.s32.totalorder %s67, %s68
    %p80 = scmp.eq.s32.totalorder %s16, 1
    %p81 = por %p79, %p80
    %p83 = scmp.ne.s32.totalorder %s68, %s82
    %p84 = scmp.eq.s32.totalorder %s16, 0
    %p85 = por %p83, %p84
    %s87 = sadd.s32 %s86, 1
    %p90 = scmp.eq.s32.totalorder %s10, 1
    %p91 = scmp.ne.s32.totalorder %s86, %s88
    %p92 = scmp.eq.s32.totalorder %s10, 0
    %p93 = por %p91, %p92
    %p94 = scmp.ne.s32.totalorder %s86, %s88
    %p95 = scmp.eq.s32.totalorder %s15, 1
    %p96 = por %p94, %p95
    %p97 = scmp.ne.s32.totalorder %s88, %s89
    %p98 = scmp.eq.s32.totalorder %s15, 0
    %p99 = por %p97, %p98
    %p100 = scmp.ne.s32.totalorder %s88, %s89
    %p101 = scmp.eq.s32.totalorder %s16, 1
    %p102 = por %p100, %p101
    %p104 = scmp.ne.s32.totalorder %s89, %s103
    %p105 = scmp.eq.s32.totalorder %s16, 0
    %p106 = por %p104, %p105
    %s107 = ssub.s32 %s10, %s17
    %p108 = scmp.eq.s32.totalorder %s107, 0
    %s110 = sadd.s32 %s109, 1
    %s111 = scalar_select %p108, %s109, %s110
    %p114 = pneg %p108
    %p115 = scmp.eq.s32.totalorder %s10, 1
    %p116 = por %p114, %p115
    %p117 = scmp.ne.s32.totalorder %s109, %s112
    %p118 = scmp.eq.s32.totalorder %s10, 0
    %p119 = por %p117, %p118
    %p120 = scmp.ne.s32.totalorder %s109, %s112
    %p121 = scmp.eq.s32.totalorder %s15, 1
    %p122 = por %p120, %p121
    %p123 = scmp.ne.s32.totalorder %s112, %s113
    %p124 = scmp.eq.s32.totalorder %s15, 0
    %p125 = por %p123, %p124
    %p126 = scmp.ne.s32.totalorder %s112, %s113
    %p127 = scmp.eq.s32.totalorder %s16, 1
    %p128 = por %p126, %p127
    %p130 = scmp.ne.s32.totalorder %s113, %s129
    %p131 = scmp.eq.s32.totalorder %s16, 0
    %p132 = por %p130, %p131
    %p133 = scmp.le.s32.totalorder 1, %s10
    %p134 = scmp.lt.s32.totalorder %s10, 3
    %p135 = pnand %p133, %p134
    %p136 = pneg %p135
    // Predicated region
    $region9: #{tpu_custom_call.1} parent=5 // pred_check
      _
    $region10: #{tpu_custom_call.1} parent=5 // pred_check_branch
      %138 = sbr.rel (%p135) target = $region12
    $region11: #{tpu_custom_call.1} parent=5 // pred_region
      %s139 = ssub.s32 %s10, 1
      // Predicated region
      $region13: #{tpu_custom_call.1} parent=11 // pred_check
        %p140 = pneg %p57
      $region14: #{tpu_custom_call.1} parent=11 // pred_check_branch
        %142 = sbr.rel (%p140) target = $region16
      $region15: #{tpu_custom_call.1} parent=11 // pred_region
        _
      $region16: #{tpu_custom_call.1} parent=11 // pred_fallthru
        _
      // Predicated region
      $region17: #{tpu_custom_call.1} parent=11 // pred_check
        %p143 = pneg %p78
      $region18: #{tpu_custom_call.1} parent=11 // pred_check_branch
        %145 = sbr.rel (%p143) target = $region20
      $region19: #{tpu_custom_call.1} parent=11 // pred_region
        _
      $region20: #{tpu_custom_call.1} parent=11 // pred_fallthru
        _
      // Predicated region
      $region21: #{tpu_custom_call.1} parent=11 // pred_check
        %p146 = pneg %p99
      $region22: #{tpu_custom_call.1} parent=11 // pred_check_branch
        %148 = sbr.rel (%p146) target = $region24
      $region23: #{tpu_custom_call.1} parent=11 // pred_region
        _
      $region24: #{tpu_custom_call.1} parent=11 // pred_fallthru
        _
    $region12: #{tpu_custom_call.1} parent=5 // pred_fallthru
      _
    %p149 = scmp.lt.s32.totalorder %s10, 2
    // Predicated region
    $region25: #{tpu_custom_call.1} parent=5 // pred_check
      %p150 = pneg %p149
    $region26: #{tpu_custom_call.1} parent=5 // pred_check_branch
      %152 = sbr.rel (%p150) target = $region28
    $region27: #{tpu_custom_call.1} parent=5 // pred_region
      // Predicated region
      $region29: #{tpu_custom_call.1} parent=27 // pred_check
        %p153 = pneg %p30
      $region30: #{tpu_custom_call.1} parent=27 // pred_check_branch
        %155 = sbr.rel (%p153) target = $region32
      $region31: #{tpu_custom_call.1} parent=27 // pred_region
        %s156 = smul.u32 8, %s10
        %p157 = scmp.lt.s32.totalorder %s156, 15
        %s158 = scalar_select %p157, %s156, 15
        %s159 = smul.addr %s158, 8
        %s160 = scalar_lea.vmem %s0, %s159
        %s161 = smul.u32 8, %s10
      $region32: #{tpu_custom_call.1} parent=27 // pred_fallthru
        _
    $region28: #{tpu_custom_call.1} parent=5 // pred_fallthru
      _
    %p162 = scmp.le.s32.totalorder 1, %s10
    %p163 = scmp.lt.s32.totalorder %s10, 3
    %p164 = pnand %p162, %p163
    %p165 = pneg %p164
    // Predicated region
    $region33: #{tpu_custom_call.1} parent=5 // pred_check
      _
    $region34: #{tpu_custom_call.1} parent=5 // pred_check_branch
      %167 = sbr.rel (%p164) target = $region36
    $region35: #{tpu_custom_call.1} parent=5 // pred_region
      %s168 = ssub.s32 %s10, 1
      %s169 = smul.u32 8, %s15
      %p170 = scmp.lt.s32.totalorder %s169, 15
      %s171 = scalar_select %p170, %s169, 15
      %s172 = smul.addr %s171, 8
      %s173 = scalar_lea.vmem %s0, %s172
      %p174 = pneg %p36
      %p175 = pneg %p33
      %p176 = pneg %p57
      %p177 = pneg %p54
      %p178 = pneg %p78
      %p179 = pneg %p75
      %p180 = pneg %p99
      %p181 = pneg %p96
      %p182 = pneg %p125
      %p183 = pneg %p122
      %s184 = smul.u32 8, %s15
      %p185 = scmp.lt.s32.totalorder %s184, 15
      %s186 = scalar_select %p185, %s184, 15
      %s187 = smul.addr %s186, 8
      %s188 = scalar_lea.vmem %s4, %s187
      %s189 = smul.u32 8, %s15
      %p190 = scmp.lt.s32.totalorder %s189, 15
      %s191 = scalar_select %p190, %s189, 15
      %s192 = smul.addr %s191, 8
      %s193 = scalar_lea.vmem %s0, %s192
      %s194 = smul.u32 8, %s15
      %s195 = smul.u32 8, %s15
      %p196 = scmp.lt.s32.totalorder %s195, 15
      %s197 = scalar_select %p196, %s195, 15
      %s198 = smul.addr %s197, 8
      %s199 = scalar_lea.vmem %s4, %s198
      %s200 = smul.u32 8, %s15
      %v201 = vld [vmem:[%s193] sm:$0xff]
      %v202 = vld [vmem:[%s193 + $0x8] sm:$0xff]
      %v203 = vld [vmem:[%s193 + $0x10] sm:$0xff]
      %v204 = vld [vmem:[%s193 + $0x18] sm:$0xff]
      %v205 = vld [vmem:[%s193 + $0x20] sm:$0xff]
      %v206 = vld [vmem:[%s193 + $0x28] sm:$0xff]
      %v207 = vld [vmem:[%s193 + $0x30] sm:$0xff]
      %v208 = vld [vmem:[%s193 + $0x38] sm:$0xff]
      %v209 = vld [vmem:[%s1] sm:$0xff]
      %v210 = vld [vmem:[%s1 + $0x8] sm:$0xff]
      %v211 = vld [vmem:[%s2] sm:$0x1]
      %v213 = vlaneseq
      %v214 = vshrl.u32 %v213, 7
      %v215 = vsub.s32 0, %v214
      %v216 = vrot.slane %v211, %v215
      %vm218 = vcmask 130048
      %v220 = vsel %vm218, %v201, 0
      %v223 = vsel %vm218, %v202, 0
      %v226 = vsel %vm218, %v203, 0
      %v229 = vsel %vm218, %v204, 0
      %v232 = vsel %vm218, %v205, 0
      %v235 = vsel %vm218, %v206, 0
      %v238 = vsel %vm218, %v207, 0
      %v241 = vsel %vm218, %v208, 0
      %243 = vmatprep.subr.mxu0 0.0
      %244 = vmatpush1.msra.mxu0 %v209
      %245 = vmatprep.subr.mxu0 0.0
      %246 = vmatpush1.msra.mxu0 %v210
      %247 = vmatprep.subr.mxu0 0.0
      %248 = vmatpush1.msra.mxu0 0.0
      %249 = vmatprep.subr.mxu0 0.0
      %250 = vmatpush1.msra.mxu0 0.0
      %251 = vmatprep.subr.mxu0 0.0
      %252 = vmatpush1.msra.mxu0 0.0
      %253 = vmatprep.subr.mxu0 0.0
      %254 = vmatpush1.msra.mxu0 0.0
      %255 = vmatprep.subr.mxu0 0.0
      %256 = vmatpush1.msra.mxu0 0.0
      %257 = vmatprep.subr.mxu0 0.0
      %258 = vmatpush1.msra.mxu0 0.0
      %259 = vmatprep.subr.mxu0 0.0
      %260 = vmatpush1.msra.mxu0 0.0
      %261 = vmatprep.subr.mxu0 0.0
      %262 = vmatpush1.msra.mxu0 0.0
      %263 = vmatprep.subr.mxu0 0.0
      %264 = vmatpush1.msra.mxu0 0.0
      %265 = vmatprep.subr.mxu0 0.0
      %266 = vmatpush1.msra.mxu0 0.0
      %267 = vmatprep.subr.mxu0 0.0
      %268 = vmatpush1.msra.mxu0 0.0
      %269 = vmatprep.subr.mxu0 0.0
      %270 = vmatpush1.msra.mxu0 0.0
      %271 = vmatprep.subr.mxu0 0.0
      %272 = vmatpush1.msra.mxu0 0.0
      %273 = vmatprep.subr.mxu0 0.0
      %274 = vmatpush1.msra.mxu0 0.0
      %275 = vmatprep.subr.mxu0 0.0
      %276 = vmatpush1.msra.mxu0 0.0
      %277 = vmatprep.subr.mxu0 0.0
      %278 = vmatpush1.msra.mxu0 0.0
      %279 = vmatprep.subr.mxu0 0.0
      %280 = vmatpush1.msra.mxu0 0.0
      %281 = vmatprep.subr.mxu0 0.0
      %282 = vmatpush1.msra.mxu0 0.0
      %283 = vmatprep.subr.mxu0 0.0
      %284 = vmatpush1.msra.mxu0 0.0
      %285 = vmatprep.subr.mxu0 0.0
      %286 = vmatpush1.msra.mxu0 0.0
      %287 = vmatprep.subr.mxu0 0.0
      %288 = vmatpush1.msra.mxu0 0.0
      %289 = vmatprep.subr.mxu0 0.0
      %290 = vmatpush1.msra.mxu0 0.0
      %291 = vmatprep.subr.mxu0 0.0
      %292 = vmatpush1.msra.mxu0 0.0
      %293 = vmatprep.subr.mxu0 0.0
      %294 = vmatpush1.msra.mxu0 0.0
      %295 = vmatprep.subr.mxu0 0.0
      %296 = vmatpush1.msra.mxu0 0.0
      %297 = vmatprep.subr.mxu0 0.0
      %298 = vmatpush1.msra.mxu0 0.0
      %299 = vmatprep.subr.mxu0 0.0
      %300 = vmatpush1.msra.mxu0 0.0
      %301 = vmatprep.subr.mxu0 0.0
      %302 = vmatpush1.msra.mxu0 0.0
      %303 = vmatprep.subr.mxu0 0.0
      %304 = vmatpush1.msra.mxu0 0.0
      %305 = vmatprep.subr.mxu0 0.0
      %306 = vmatpush1.msra.mxu0 0.0
      %307 = vmatprep.mubr.f32.mxu0 0.0
      %308 = vmatmul.mubr.f32.gmra.mrb[0].mxu0 %v220
      %v309 = vpop.f32.mrb[0].mxu0
      %v310 = vadd.f32 %v216, %v309
      %v311 = vpop.f32.mrb[0].mxu0
      %312 = vmatprep.mubr.f32.mxu0 0.0
      %313 = vmatmul.mubr.f32.gmra.mrb[0].mxu0 %v223
      %v314 = vpop.f32.mrb[0].mxu0
      %v315 = vadd.f32 %v216, %v314
      %v316 = vpop.f32.mrb[0].mxu0
      %317 = vmatprep.mubr.f32.mxu0 0.0
      %318 = vmatmul.mubr.f32.gmra.mrb[0].mxu0 %v226
      %v319 = vpop.f32.mrb[0].mxu0
      %v320 = vadd.f32 %v216, %v319
      %v321 = vpop.f32.mrb[0].mxu0
      %322 = vmatprep.mubr.f32.mxu0 0.0
      %323 = vmatmul.mubr.f32.gmra.mrb[0].mxu0 %v229
      %v324 = vpop.f32.mrb[0].mxu0
      %v325 = vadd.f32 %v216, %v324
      %v326 = vpop.f32.mrb[0].mxu0
      %327 = vmatprep.mubr.f32.mxu0 0.0
      %328 = vmatmul.mubr.f32.gmra.mrb[0].mxu0 %v232
      %v329 = vpop.f32.mrb[0].mxu0
      %v330 = vadd.f32 %v216, %v329
      %v331 = vpop.f32.mrb[0].mxu0
      %332 = vmatprep.mubr.f32.mxu0 0.0
      %333 = vmatmul.mubr.f32.gmra.mrb[0].mxu0 %v235
      %v334 = vpop.f32.mrb[0].mxu0
      %v335 = vadd.f32 %v216, %v334
      %v336 = vpop.f32.mrb[0].mxu0
      %337 = vmatprep.mubr.f32.mxu0 0.0
      %338 = vmatmul.mubr.f32.gmra.mrb[0].mxu0 %v238
      %v339 = vpop.f32.mrb[0].mxu0
      %v340 = vadd.f32 %v216, %v339
      %v341 = vpop.f32.mrb[0].mxu0
      %342 = vmatprep.mubr.f32.mxu0 0.0
      %343 = vmatmul.mubr.f32.gmra.mrb[0].mxu0 %v241
      %v344 = vpop.f32.mrb[0].mxu0
      %v345 = vadd.f32 %v216, %v344
      %v346 = vpop.f32.mrb[0].mxu0
      %347 = vdwg.mxu0
      %v348 = vmax.f32 %v310, 0.0
      %v349 = vmax.f32 %v315, 0.0
      %v350 = vmax.f32 %v320, 0.0
      %v351 = vmax.f32 %v325, 0.0
      %v352 = vmax.f32 %v330, 0.0
      %v353 = vmax.f32 %v335, 0.0
      %v354 = vmax.f32 %v340, 0.0
      %v355 = vmax.f32 %v345, 0.0
      %v356 = vld [vmem:[%s3] sm:$0xff]
      %v357 = vld [vmem:[%s3 + $0x8] sm:$0xff]
      %v358 = vld [vmem:[%s3 + $0x10] sm:$0xff]
      %v359 = vld [vmem:[%s3 + $0x18] sm:$0xff]
      %v360 = vld [vmem:[%s3 + $0x20] sm:$0x1]
      %vm361 = vcmask 269312
      %v363 = vsel %vm361, %v348, 0
      %v366 = vsel %vm361, %v349, 0
      %v369 = vsel %vm361, %v350, 0
      %v372 = vsel %vm361, %v351, 0
      %v375 = vsel %vm361, %v352, 0
      %v378 = vsel %vm361, %v353, 0
      %v381 = vsel %vm361, %v354, 0
      %v384 = vsel %vm361, %v355, 0
      %vm386 = vcmask 1040384
      %v388 = vsel %vm386, %v360, 0
      %390 = vmatprep.subr.mxu0 0.0
      %391 = vmatpush1.msra.mxu0 %v356
      %392 = vmatprep.subr.mxu0 0.0
      %393 = vmatpush1.msra.mxu0 %v357
      %394 = vmatprep.subr.mxu0 0.0
      %395 = vmatpush1.msra.mxu0 %v358
      %396 = vmatprep.subr.mxu0 0.0
      %397 = vmatpush1.msra.mxu0 %v359
      %398 = vmatprep.subr.mxu0 0.0
      %399 = vmatpush1.msra.mxu0 %v388
      %400 = vmatprep.subr.mxu0 0.0
      %401 = vmatpush1.msra.mxu0 0.0
      %402 = vmatprep.subr.mxu0 0.0
      %403 = vmatpush1.msra.mxu0 0.0
      %404 = vmatprep.subr.mxu0 0.0
      %405 = vmatpush1.msra.mxu0 0.0
      %406 = vmatprep.subr.mxu0 0.0
      %407 = vmatpush1.msra.mxu0 0.0
      %408 = vmatprep.subr.mxu0 0.0
      %409 = vmatpush1.msra.mxu0 0.0
      %410 = vmatprep.subr.mxu0 0.0
      %411 = vmatpush1.msra.mxu0 0.0
      %412 = vmatprep.subr.mxu0 0.0
      %413 = vmatpush1.msra.mxu0 0.0
      %414 = vmatprep.subr.mxu0 0.0
      %415 = vmatpush1.msra.mxu0 0.0
      %416 = vmatprep.subr.mxu0 0.0
      %417 = vmatpush1.msra.mxu0 0.0
      %418 = vmatprep.subr.mxu0 0.0
      %419 = vmatpush1.msra.mxu0 0.0
      %420 = vmatprep.subr.mxu0 0.0
      %421 = vmatpush1.msra.mxu0 0.0
      %422 = vmatprep.subr.mxu0 0.0
      %423 = vmatpush1.msra.mxu0 0.0
      %424 = vmatprep.subr.mxu0 0.0
      %425 = vmatpush1.msra.mxu0 0.0
      %426 = vmatprep.subr.mxu0 0.0
      %427 = vmatpush1.msra.mxu0 0.0
      %428 = vmatprep.subr.mxu0 0.0
      %429 = vmatpush1.msra.mxu0 0.0
      %430 = vmatprep.subr.mxu0 0.0
      %431 = vmatpush1.msra.mxu0 0.0
      %432 = vmatprep.subr.mxu0 0.0
      %433 = vmatpush1.msra.mxu0 0.0
      %434 = vmatprep.subr.mxu0 0.0
      %435 = vmatpush1.msra.mxu0 0.0
      %436 = vmatprep.subr.mxu0 0.0
      %437 = vmatpush1.msra.mxu0 0.0
      %438 = vmatprep.subr.mxu0 0.0
      %439 = vmatpush1.msra.mxu0 0.0
      %440 = vmatprep.subr.mxu0 0.0
      %441 = vmatpush1.msra.mxu0 0.0
      %442 = vmatprep.subr.mxu0 0.0
      %443 = vmatpush1.msra.mxu0 0.0
      %444 = vmatprep.subr.mxu0 0.0
      %445 = vmatpush1.msra.mxu0 0.0
      %446 = vmatprep.subr.mxu0 0.0
      %447 = vmatpush1.msra.mxu0 0.0
      %448 = vmatprep.subr.mxu0 0.0
      %449 = vmatpush1.msra.mxu0 0.0
      %450 = vmatprep.subr.mxu0 0.0
      %451 = vmatpush1.msra.mxu0 0.0
      %452 = vmatprep.subr.mxu0 0.0
      %453 = vmatpush1.msra.mxu0 0.0
      %454 = vmatprep.mubr.f32.mxu0 0.0
      %455 = vmatmul.mubr.f32.gmra.mrb[0].mxu0 %v363
      %v456 = vpop.f32.mrb[0].mxu0
      %v457 = vadd.f32 0.0, %v456
      %v458 = vpop.f32.mrb[0].mxu0
      %459 = vmatprep.mubr.f32.mxu0 0.0
      %460 = vmatmul.mubr.f32.gmra.mrb[0].mxu0 %v366
      %v461 = vpop.f32.mrb[0].mxu0
      %v462 = vadd.f32 0.0, %v461
      %v463 = vpop.f32.mrb[0].mxu0
      %464 = vmatprep.mubr.f32.mxu0 0.0
      %465 = vmatmul.mubr.f32.gmra.mrb[0].mxu0 %v369
      %v466 = vpop.f32.mrb[0].mxu0
      %v467 = vadd.f32 0.0, %v466
      %v468 = vpop.f32.mrb[0].mxu0
      %469 = vmatprep.mubr.f32.mxu0 0.0
      %470 = vmatmul.mubr.f32.gmra.mrb[0].mxu0 %v372
      %v471 = vpop.f32.mrb[0].mxu0
      %v472 = vadd.f32 0.0, %v471
      %v473 = vpop.f32.mrb[0].mxu0
      %474 = vmatprep.mubr.f32.mxu0 0.0
      %475 = vmatmul.mubr.f32.gmra.mrb[0].mxu0 %v375
      %v476 = vpop.f32.mrb[0].mxu0
      %v477 = vadd.f32 0.0, %v476
      %v478 = vpop.f32.mrb[0].mxu0
      %479 = vmatprep.mubr.f32.mxu0 0.0
      %480 = vmatmul.mubr.f32.gmra.mrb[0].mxu0 %v378
      %v481 = vpop.f32.mrb[0].mxu0
      %v482 = vadd.f32 0.0, %v481
      %v483 = vpop.f32.mrb[0].mxu0
      %484 = vmatprep.mubr.f32.mxu0 0.0
      %485 = vmatmul.mubr.f32.gmra.mrb[0].mxu0 %v381
      %v486 = vpop.f32.mrb[0].mxu0
      %v487 = vadd.f32 0.0, %v486
      %v488 = vpop.f32.mrb[0].mxu0
      %489 = vmatprep.mubr.f32.mxu0 0.0
      %490 = vmatmul.mubr.f32.gmra.mrb[0].mxu0 %v384
      %v491 = vpop.f32.mrb[0].mxu0
      %v492 = vadd.f32 0.0, %v491
      %v493 = vpop.f32.mrb[0].mxu0
      %494 = vdwg.mxu0
      %495 = vadd.xlane.f32.xlu0 %v457
      %v496 = vpop.xlane.xlu0 %495
      %497 = vadd.xlane.f32.xlu0 %v462
      %v498 = vpop.xlane.xlu0 %497
      %499 = vadd.xlane.f32.xlu0 %v467
      %v500 = vpop.xlane.xlu0 %499
      %501 = vadd.xlane.f32.xlu0 %v472
      %v502 = vpop.xlane.xlu0 %501
      %503 = vadd.xlane.f32.xlu0 %v477
      %v504 = vpop.xlane.xlu0 %503
      %505 = vadd.xlane.f32.xlu0 %v482
      %v506 = vpop.xlane.xlu0 %505
      %507 = vadd.xlane.f32.xlu0 %v487
      %v508 = vpop.xlane.xlu0 %507
      %509 = vadd.xlane.f32.xlu0 %v492
      %v510 = vpop.xlane.xlu0 %509
      %v511 = vsub.f32 %v496, %v457
      %v512 = vsub.f32 %v498, %v462
      %v513 = vsub.f32 %v500, %v467
      %v514 = vsub.f32 %v502, %v472
      %v515 = vsub.f32 %v504, %v477
      %v516 = vsub.f32 %v506, %v482
      %v517 = vsub.f32 %v508, %v487
      %v518 = vsub.f32 %v510, %v492
      %v519 = vmul.f32 %v511, 0.125
      %v520 = vmul.f32 %v512, 0.125
      %v521 = vmul.f32 %v513, 0.125
      %v522 = vmul.f32 %v514, 0.125
      %v523 = vmul.f32 %v515, 0.125
      %v524 = vmul.f32 %v516, 0.125
      %v525 = vmul.f32 %v517, 0.125
      %v526 = vmul.f32 %v518, 0.125
      %v527 = vsub.f32 %v457, %v519
      %v528 = vsub.f32 %v462, %v520
      %v529 = vsub.f32 %v467, %v521
      %v530 = vsub.f32 %v472, %v522
      %v531 = vsub.f32 %v477, %v523
      %v532 = vsub.f32 %v482, %v524
      %v533 = vsub.f32 %v487, %v525
      %v534 = vsub.f32 %v492, %v526
      %536 = vset.pattern.permute.xlu0 8
      %537 = vperm.xlu0 %536, %v527
      %v538 = vpop.permute.xlu0 %537
      %541 = vset.pattern.permute.xlu0 8
      %542 = vperm.xlu0 %541, %v528
      %v543 = vpop.permute.xlu0 %542
      %546 = vset.pattern.permute.xlu0 8
      %547 = vperm.xlu0 %546, %v529
      %v548 = vpop.permute.xlu0 %547
      %551 = vset.pattern.permute.xlu0 8
      %552 = vperm.xlu0 %551, %v530
      %v553 = vpop.permute.xlu0 %552
      %556 = vset.pattern.permute.xlu0 8
      %557 = vperm.xlu0 %556, %v531
      %v558 = vpop.permute.xlu0 %557
      %561 = vset.pattern.permute.xlu0 8
      %562 = vperm.xlu0 %561, %v532
      %v563 = vpop.permute.xlu0 %562
      %566 = vset.pattern.permute.xlu0 8
      %567 = vperm.xlu0 %566, %v533
      %v568 = vpop.permute.xlu0 %567
      %571 = vset.pattern.permute.xlu0 8
      %572 = vperm.xlu0 %571, %v534
      %v573 = vpop.permute.xlu0 %572
      %v575 = vadd.f32 %v457, %v538
      %v576 = vadd.f32 %v462, %v543
      %v577 = vadd.f32 %v467, %v548
      %v578 = vadd.f32 %v472, %v553
      %v579 = vadd.f32 %v477, %v558
      %v580 = vadd.f32 %v482, %v563
      %v581 = vadd.f32 %v487, %v568
      %v582 = vadd.f32 %v492, %v573
      %vm583 = vcmask 64512
      %584 = vst.msk [vmem:[%s199] sm:$0xff] %vm583, %v575
      %585 = vst.msk [vmem:[%s199 + $0x8] sm:$0xff] %vm583, %v576
      %586 = vst.msk [vmem:[%s199 + $0x10] sm:$0xff] %vm583, %v577
      %587 = vst.msk [vmem:[%s199 + $0x18] sm:$0xff] %vm583, %v578
      %588 = vst.msk [vmem:[%s199 + $0x20] sm:$0xff] %vm583, %v579
      %589 = vst.msk [vmem:[%s199 + $0x28] sm:$0xff] %vm583, %v580
      %590 = vst.msk [vmem:[%s199 + $0x30] sm:$0xff] %vm583, %v581
      %591 = vst.msk [vmem:[%s199 + $0x38] sm:$0xff] %vm583, %v582
      %s592 = smul.u32 8, %s15
      %p593 = scmp.lt.s32.totalorder %s592, 15
      %s594 = scalar_select %p593, %s592, 15
      %s595 = smul.addr %s594, 8
      %s596 = scalar_lea.vmem %s4, %s595
      // Predicated region
      $region37: #{tpu_custom_call.1} parent=35 // pred_check
        %p597 = pneg %p122
      $region38: #{tpu_custom_call.1} parent=35 // pred_check_branch
        %599 = sbr.rel (%p597) target = $region40
      $region39: #{tpu_custom_call.1} parent=35 // pred_region
        %s600 = smul.u32 8, %s15
      $region40: #{tpu_custom_call.1} parent=35 // pred_fallthru
        _
    $region36: #{tpu_custom_call.1} parent=5 // pred_fallthru
      _
    %p601 = scmp.le.s32.totalorder 2, %s10
    // Predicated region
    $region41: #{tpu_custom_call.1} parent=5 // pred_check
      %p602 = pneg %p601
    $region42: #{tpu_custom_call.1} parent=5 // pred_check_branch
      %604 = sbr.rel (%p602) target = $region44
    $region43: #{tpu_custom_call.1} parent=5 // pred_region
      %s605 = ssub.s32 %s10, 2
      // Predicated region
      $region45: #{tpu_custom_call.1} parent=43 // pred_check
        %p606 = pneg %p128
      $region46: #{tpu_custom_call.1} parent=43 // pred_check_branch
        %608 = sbr.rel (%p606) target = $region48
      $region47: #{tpu_custom_call.1} parent=43 // pred_region
        %s609 = smul.u32 8, %s16
        %p610 = scmp.lt.s32.totalorder %s609, 15
        %s611 = scalar_select %p610, %s609, 15
        %s612 = smul.addr %s611, 8
        %s613 = scalar_lea.vmem %s4, %s612
      $region48: #{tpu_custom_call.1} parent=43 // pred_fallthru
        _
    $region44: #{tpu_custom_call.1} parent=5 // pred_fallthru
      _
  $region6: #{tpu_custom_call.1} parent=0 // loop_footer
    %s14 = sadd.s32 1, %s10
  $region7: #{tpu_custom_call.1} parent=0 // loop_footer_branch
    %9 = sbr.rel target = $region3
  $region8: #{tpu_custom_call.1} parent=0 // loop_exit
    _

</llo_original>
